<compile_context>
chip_gen: v7x
topology: tpu7x:2x2x1
jax: 0.10.0
libtpu: 0.0.40
codegen_flags: <defaults>
</compile_context>

<pallas_src>
import functools
from typing import Tuple

import jax
import jax.numpy as jnp
from jax.experimental import pallas as pl
from jax.experimental.pallas import tpu as pltpu

_FALLBACK_VMEM_LIMIT = 32 * 1024 * 1024


# ----------------------------------------------------------------------------
# Generation-aware budgets / tile targets
# ----------------------------------------------------------------------------
def _vmem_limit_bytes() -> int:
    """Scoped-VMEM budget: ~75% of physical (≈96 MiB v5e/v6e, ≈48 MiB v7x)."""
    try:
        cap = int(pltpu.get_tpu_info().vmem_capacity_bytes)
        return max(_FALLBACK_VMEM_LIMIT, (cap * 3) // 4)
    except Exception:
        return _FALLBACK_VMEM_LIMIT


def _tile_targets(vmem_limit: int) -> Tuple[int, int, int]:
    """(tm, tn, tk) targets sized to the available scoped VMEM."""
    if vmem_limit >= 80 * 1024 * 1024:       # v5e / v6e (128 MiB physical)
        return 512, 1024, 1024
    if vmem_limit >= 40 * 1024 * 1024:       # v7x (64 MiB physical per TC)
        return 512, 768, 768
    return 256, 512, 512                     # conservative fallback


# ----------------------------------------------------------------------------
# Padding / tiling helpers
# ----------------------------------------------------------------------------
def _round_up(x: int, m: int) -> int:
    return (x + m - 1) // m * m


def _choose_tile(dim: int, target: int, align: int) -> Tuple[int, int]:
    """Tile (multiple of `align`, <= target) minimizing grid steps, then padding.

    Pads the dimension UP to a multiple of the chosen tile (zero padding is
    matmul-safe) instead of shrinking the tile until it divides the dim.
    Returns (tile, padded_dim) with padded_dim % tile == 0.
    """
    target = max(align, (target // align) * align)
    best = None
    t = target
    while t >= align:
        p = _round_up(dim, t)
        key = (p // t, p)                    # (grid steps, padded size)
        if best is None or key < best[0]:
            best = (key, t, p)
        t -= align
    return best[1], best[2]


def _pad2(a, rows: int, cols: int):
    pr, pc = rows - a.shape[0], cols - a.shape[1]
    if pr == 0 and pc == 0:
        return a
    return jnp.pad(a, ((0, pr), (0, pc)))


# ----------------------------------------------------------------------------
# Fused whole-MLP kernel (weights resident in VMEM, activation never hits HBM)
# ----------------------------------------------------------------------------
def _fused_kernel(*refs, n_layers: int):
    # refs = (x_ref, w0_ref, b0_ref, w1_ref, b1_ref, ..., o_ref)
    x_ref, o_ref = refs[0], refs[-1]
    cdt = x_ref.dtype
    h = x_ref[...]
    for i in range(n_layers):
        w_ref = refs[1 + 2 * i]
        b_ref = refs[2 + 2 * i]
        y = jnp.dot(h, w_ref[...], preferred_element_type=jnp.float32)
        y = y + b_ref[...].astype(jnp.float32)           # (1, Dout) broadcasts
        if i < n_layers - 1:
            h = jnp.tanh(y).astype(cdt)
        else:
            h = y
    o_ref[...] = h.astype(o_ref.dtype)


def _mlp_fused(x_p, ws_p, bs_p, *, tm: int, out_dtype, vmem_limit: int):
    Bp, din0_p = x_p.shape
    n = len(ws_p)
    dout_last_p = ws_p[-1].shape[1]

    in_specs = [pl.BlockSpec((tm, din0_p), lambda i: (i, 0))]
    operands = [x_p]
    for w_p, b_p in zip(ws_p, bs_p):
        din_p, dout_p = w_p.shape
        in_specs.append(pl.BlockSpec((din_p, dout_p), lambda i: (0, 0)))
        in_specs.append(pl.BlockSpec((1, dout_p), lambda i: (0, 0)))
        operands.extend([w_p, b_p])

    return pl.pallas_call(
        functools.partial(_fused_kernel, n_layers=n),
        out_shape=jax.ShapeDtypeStruct((Bp, dout_last_p), out_dtype),
        grid_spec=pltpu.PrefetchScalarGridSpec(
            num_scalar_prefetch=0,
            grid=(Bp // tm,),
            in_specs=in_specs,
            out_specs=pl.BlockSpec((tm, dout_last_p), lambda i: (i, 0)),
        ),
        compiler_params=pltpu.CompilerParams(
            dimension_semantics=("parallel",),
            vmem_limit_bytes=vmem_limit,
        ),
    )(*operands)


def _fused_fits(tm: int, dims_p, cdt_bytes: int, out_bytes: int,
                vmem_limit: int) -> bool:
    """Rough VMEM estimate for the fused path (2x for double-buffered specs)."""
    n = len(dims_p) - 1
    w_bytes = sum(2 * dims_p[i] * dims_p[i + 1] * cdt_bytes for i in range(n))
    b_bytes = sum(2 * dims_p[i + 1] * 4 for i in range(n))
    x_bytes = 2 * tm * dims_p[0] * cdt_bytes
    o_bytes = 2 * tm * dims_p[-1] * out_bytes
    act_bytes = 4 * tm * max(dims_p) * 4      # traced intermediates, generous
    need = w_bytes + b_bytes + x_bytes + o_bytes + act_bytes
    return need <= int(vmem_limit * 0.7)


# ----------------------------------------------------------------------------
# Per-layer tiled fallback (big MLPs): 3-D tiled matmul, K innermost
# ----------------------------------------------------------------------------
def _linear_kernel_acc(x_ref, w_ref, b_ref, o_ref, acc_ref, *, apply_act: bool):
    @pl.when(pl.program_id(2) == 0)
    def _():
        acc_ref[...] = jnp.zeros_like(acc_ref)

    acc_ref[...] += jnp.dot(x_ref[...], w_ref[...],
                            preferred_element_type=jnp.float32)

    @pl.when(pl.program_id(2) == pl.num_programs(2) - 1)
    def _():
        y = acc_ref[...] + b_ref[...].astype(jnp.float32)
        if apply_act:
            y = jnp.tanh(y)
        o_ref[...] = y.astype(o_ref.dtype)


def _linear_kernel_noacc(x_ref, w_ref, b_ref, o_ref, *, apply_act: bool):
    # Single-K-step layer: no accumulator zero-init / readback (saves VMEM
    # traversals; matters on v5e's single vst slot).
    y = jnp.dot(x_ref[...], w_ref[...], preferred_element_type=jnp.float32)
    y = y + b_ref[...].astype(jnp.float32)
    if apply_act:
        y = jnp.tanh(y)
    o_ref[...] = y.astype(o_ref.dtype)


def _linear_layer(x_p, w_p, b_p, *, apply_act: bool, tm: int, tn: int, tk: int,
                  out_dtype, vmem_limit: int):
    Bp, din_p = x_p.shape
    dout_p = w_p.shape[1]
    k_steps = din_p // tk

    if k_steps == 1:
        kernel = functools.partial(_linear_kernel_noacc, apply_act=apply_act)
        grid = (Bp // tm, dout_p // tn)
        in_specs = [
            pl.BlockSpec((tm, tk), lambda i, j: (i, 0)),
            pl.BlockSpec((tk, tn), lambda i, j: (0, j)),
            pl.BlockSpec((1, tn), lambda i, j: (0, j)),
        ]
        out_specs = pl.BlockSpec((tm, tn), lambda i, j: (i, j))
        scratch = []
        sem = ("parallel", "parallel")
    else:
        kernel = functools.partial(_linear_kernel_acc, apply_act=apply_act)
        grid = (Bp // tm, dout_p // tn, k_steps)
        in_specs = [
            pl.BlockSpec((tm, tk), lambda i, j, k: (i, k)),
            pl.BlockSpec((tk, tn), lambda i, j, k: (k, j)),
            pl.BlockSpec((1, tn), lambda i, j, k: (0, j)),
        ]
        out_specs = pl.BlockSpec((tm, tn), lambda i, j, k: (i, j))
        scratch = [pltpu.VMEM((tm, tn), jnp.float32)]
        sem = ("parallel", "parallel", "arbitrary")

    return pl.pallas_call(
        kernel,
        out_shape=jax.ShapeDtypeStruct((Bp, dout_p), out_dtype),
        grid_spec=pltpu.PrefetchScalarGridSpec(
            num_scalar_prefetch=0,
            grid=grid,
            in_specs=in_specs,
            out_specs=out_specs,
            scratch_shapes=scratch,
        ),
        compiler_params=pltpu.CompilerParams(
            dimension_semantics=sem,
            vmem_limit_bytes=vmem_limit,
        ),
    )(x_p, w_p, b_p)


# ----------------------------------------------------------------------------
# Parameters / forward / reference
# ----------------------------------------------------------------------------
def init_mlp_params(key, sizes: Tuple[int, ...], bias: bool = True,
                    dtype=jnp.float32):
    """Shapes match nn.Linear; weight stored as (in, out) = PyTorch W^T."""
    params = []
    for i in range(len(sizes) - 1):
        key, kw, kb = jax.random.split(key, 3)
        bound = 1.0 / (sizes[i] ** 0.5)
        w = jax.random.uniform(kw, (sizes[i], sizes[i + 1]),
                               minval=-bound, maxval=bound, dtype=dtype)
        if bias:
            b = jax.random.uniform(kb, (1, sizes[i + 1]),
                                   minval=-bound, maxval=bound, dtype=dtype)
        else:
            b = jnp.zeros((1, sizes[i + 1]), dtype=dtype)
        params.append((w, b))
    return params


def mlp_forward(x, params, compute_dtype=None, fuse=None):
    """Equivalent of MLP.forward: Linear -> Tanh -> ... -> Linear."""
    out_dtype = x.dtype
    cdt = jnp.dtype(compute_dtype) if compute_dtype is not None else jnp.dtype(x.dtype)
    B, din0 = x.shape
    n = len(params)

    vmem_limit = _vmem_limit_bytes()
    tm_target, tn_target, tk_target = _tile_targets(vmem_limit)

    # Batch tile: sublane-aligned (8 f32 / 16 bf16); 128-aligned once batch is big.
    sublane = max(8, 32 // max(1, cdt.itemsize))
    m_align = 128 if B >= 128 else sublane
    tm, Bp = _choose_tile(B, tm_target, m_align)

    dims = [din0] + [w.shape[1] for (w, _) in params]
    dims_p128 = [_round_up(d, 128) for d in dims]

    do_fuse = fuse
    if do_fuse is None:
        do_fuse = _fused_fits(tm, dims_p128, cdt.itemsize,
                              jnp.dtype(out_dtype).itemsize, vmem_limit)

    if do_fuse:
        # Give both TensorCores (v7x) work if splitting the batch costs no padding.
        if Bp // tm == 1 and Bp >= 2 * m_align and Bp % (2 * m_align) == 0:
            tm = Bp // 2
        x_p = _pad2(x, Bp, dims_p128[0]).astype(cdt)
        ws_p, bs_p = [], []
        for i, (w, b) in enumerate(params):
            ws_p.append(_pad2(w, dims_p128[i], dims_p128[i + 1]).astype(cdt))
            bs_p.append(_pad2(b, 1, dims_p128[i + 1]).astype(jnp.float32))
        y = _mlp_fused(x_p, ws_p, bs_p, tm=tm, out_dtype=out_dtype,
                       vmem_limit=vmem_limit)
        return y[:B, :dims[-1]]

    # Per-layer tiled fallback.
    h = _pad2(x, Bp, x.shape[1]).astype(cdt)
    for i, (w, b) in enumerate(params):
        din, dout = w.shape
        tk, din_p = _choose_tile(din, tk_target, 128)
        tn, dout_p = _choose_tile(dout, tn_target, 128)
        # Align the activation feature width with this layer's padded K width
        # (columns beyond `din` are exact zeros, so pad/slice is value-safe).
        if h.shape[1] < din_p:
            h = _pad2(h, Bp, din_p)
        elif h.shape[1] > din_p:
            h = h[:, :din_p]
        w_p = _pad2(w, din_p, dout_p).astype(cdt)
        b_p = _pad2(b, 1, dout_p).astype(jnp.float32)
        apply_act = i < n - 1
        h = _linear_layer(h, w_p, b_p, apply_act=apply_act, tm=tm, tn=tn, tk=tk,
                          out_dtype=cdt if apply_act else out_dtype,
                          vmem_limit=vmem_limit)
    return h[:B, :dims[-1]]


def mlp_reference(x, params, compute_dtype=None):
    """Pure-JAX reference mimicking the kernel's dtype handling."""
    out_dtype = x.dtype
    cdt = jnp.dtype(compute_dtype) if compute_dtype is not None else jnp.dtype(x.dtype)
    n = len(params)
    h = x.astype(cdt)
    for i, (w, b) in enumerate(params):
        y = jnp.dot(h, w.astype(cdt), preferred_element_type=jnp.float32)
        y = y + b.astype(jnp.float32)
        if i < n - 1:
            h = jnp.tanh(y).astype(cdt)
        else:
            h = y.astype(out_dtype)
    return h


if __name__ == "__main__":
    key = jax.random.PRNGKey(0)

    # 1) Shapes implied by the module: MLP((32, 64, 16)), batch=8, f32 (fused path).
    sizes = (32, 64, 16)
    batch = 8
    key, kx, kp = jax.random.split(key, 3)
    x = jax.random.normal(kx, (batch, sizes[0]), dtype=jnp.float32)
    params = init_mlp_params(kp, sizes, bias=True)
    out = jax.block_until_ready(jax.jit(mlp_forward)(x, params))
    ref = mlp_reference(x, params)
    assert out.shape == (batch, sizes[-1])
    assert jnp.allclose(out, ref, atol=1e-5, rtol=1e-5)

    # 2) Ragged dims: exercises zero-padding on every axis (fused path).
    sizes2 = (640, 130, 33)
    batch2 = 20
    key, kx2, kp2 = jax.random.split(key, 3)
    x2 = jax.random.normal(kx2, (batch2, sizes2[0]), dtype=jnp.float32)
    params2 = init_mlp_params(kp2, sizes2, bias=True)
    out2 = jax.block_until_ready(jax.jit(mlp_forward)(x2, params2))
    ref2 = mlp_reference(x2, params2)
    assert out2.shape == (batch2, sizes2[-1])
    assert jnp.allclose(out2, ref2, atol=1e-4, rtol=1e-4)

    # 3) Forced per-layer tiled fallback: multi-step K accumulator path +
    #    single-K-step (no-accumulator) path.
    sizes3 = (1536, 256, 64)
    batch3 = 16
    key, kx3, kp3 = jax.random.split(key, 3)
    x3 = jax.random.normal(kx3, (batch3, sizes3[0]), dtype=jnp.float32)
    params3 = init_mlp_params(kp3, sizes3, bias=True)
    out3 = jax.block_until_ready(
        jax.jit(functools.partial(mlp_forward, fuse=False))(x3, params3))
    ref3 = mlp_reference(x3, params3)
    assert out3.shape == (batch3, sizes3[-1])
    assert jnp.allclose(out3, ref3, atol=1e-4, rtol=1e-4)

    # 4) bf16 operand path (halves weight DMA, bf16 MXU); f32 accumulation.
    out4 = jax.block_until_ready(
        jax.jit(functools.partial(mlp_forward, compute_dtype=jnp.bfloat16))(x, params))
    ref4 = mlp_reference(x, params, compute_dtype=jnp.bfloat16)
    assert out4.shape == (batch, sizes[-1])
    assert jnp.allclose(out4, ref4, atol=2e-2, rtol=2e-2)

    print("KERNEL_OK")
</pallas_src>

<mosaic_0001>
module attributes {stable_mosaic.version = 11 : i64} {
  func.func @_fused_kernel(%arg0: i32, %arg1: memref<8x128xf32, #tpu.memory_space<vmem>>, %arg2: memref<128x128xf32, #tpu.memory_space<vmem>>, %arg3: memref<1x128xf32, #tpu.memory_space<vmem>>, %arg4: memref<128x128xf32, #tpu.memory_space<vmem>>, %arg5: memref<1x128xf32, #tpu.memory_space<vmem>>, %arg6: memref<8x128xf32, #tpu.memory_space<vmem>>) attributes {dimension_semantics = [#tpu.dimension_semantics<parallel>], iteration_bounds = array<i64: 1>, scalar_prefetch = 0 : i64, scratch_operands = 0 : i64, tpu.core_type = #tpu.core_type<tc>, window_params = [{transform_indices = @transform_0, window_bounds = array<i64: 8, 128>}, {pipeline_mode = #tpu.pipeline_mode<synchronous>, transform_indices = @transform_1, window_bounds = array<i64: 128, 128>}, {pipeline_mode = #tpu.pipeline_mode<synchronous>, transform_indices = @transform_2, window_bounds = array<i64: 1, 128>}, {pipeline_mode = #tpu.pipeline_mode<synchronous>, transform_indices = @transform_3, window_bounds = array<i64: 128, 128>}, {pipeline_mode = #tpu.pipeline_mode<synchronous>, transform_indices = @transform_4, window_bounds = array<i64: 1, 128>}, {transform_indices = @transform_5, window_bounds = array<i64: 8, 128>}]} {
    %c0 = arith.constant 0 : index
    %c0_0 = arith.constant 0 : index
    %0 = vector.load %arg1[%c0, %c0_0] : memref<8x128xf32, #tpu.memory_space<vmem>>, vector<8x128xf32>
    %c0_1 = arith.constant 0 : index
    %c0_2 = arith.constant 0 : index
    %1 = vector.load %arg2[%c0_1, %c0_2] : memref<128x128xf32, #tpu.memory_space<vmem>>, vector<128x128xf32>
    %cst = arith.constant dense<0.000000e+00> : vector<8x128xf32>
    %2 = tpu.matmul %0, %1, %cst {dimension_numbers = #tpu.dot_dimension_numbers<[1], [0], [0], [1], [0, 0, 1, 1], [], []>} : vector<8x128xf32>, vector<128x128xf32>, vector<8x128xf32> -> vector<8x128xf32>
    %c0_3 = arith.constant 0 : index
    %c0_4 = arith.constant 0 : index
    %3 = vector.load %arg3[%c0_3, %c0_4] : memref<1x128xf32, #tpu.memory_space<vmem>>, vector<1x128xf32>
    %4 = vector.broadcast %3 : vector<1x128xf32> to vector<8x128xf32>
    %5 = arith.addf %2, %4 : vector<8x128xf32>
    %6 = math.tanh %5 : vector<8x128xf32>
    %c0_5 = arith.constant 0 : index
    %c0_6 = arith.constant 0 : index
    %7 = vector.load %arg4[%c0_5, %c0_6] : memref<128x128xf32, #tpu.memory_space<vmem>>, vector<128x128xf32>
    %cst_7 = arith.constant dense<0.000000e+00> : vector<8x128xf32>
    %8 = tpu.matmul %6, %7, %cst_7 {dimension_numbers = #tpu.dot_dimension_numbers<[1], [0], [0], [1], [0, 0, 1, 1], [], []>} : vector<8x128xf32>, vector<128x128xf32>, vector<8x128xf32> -> vector<8x128xf32>
    %c0_8 = arith.constant 0 : index
    %c0_9 = arith.constant 0 : index
    %9 = vector.load %arg5[%c0_8, %c0_9] : memref<1x128xf32, #tpu.memory_space<vmem>>, vector<1x128xf32>
    %10 = vector.broadcast %9 : vector<1x128xf32> to vector<8x128xf32>
    %11 = arith.addf %8, %10 : vector<8x128xf32>
    %c0_10 = arith.constant 0 : index
    %c0_11 = arith.constant 0 : index
    %12 = vector.load %arg6[%c0_10, %c0_11] : memref<8x128xf32, #tpu.memory_space<vmem>>, vector<8x128xf32>
    tpu.vector_store %arg6[%c0_10, %c0_11], %11 {strides = array<i32>} : memref<8x128xf32, #tpu.memory_space<vmem>>, vector<8x128xf32>,
    return
  }
  func.func @transform_0(%arg0: i32) -> (i32, i32) {
    %c0_i32 = arith.constant 0 : i32
    %c0_i32_0 = arith.constant 0 : i32
    return %arg0, %c0_i32 : i32, i32
  }
  func.func @transform_1(%arg0: i32) -> (i32, i32) {
    %c0_i32 = arith.constant 0 : i32
    %c0_i32_0 = arith.constant 0 : i32
    %c0_i32_1 = arith.constant 0 : i32
    return %c0_i32, %c0_i32_0 : i32, i32
  }
  func.func @transform_2(%arg0: i32) -> (i32, i32) {
    %c0_i32 = arith.constant 0 : i32
    %c0_i32_0 = arith.constant 0 : i32
    %c0_i32_1 = arith.constant 0 : i32
    return %c0_i32, %c0_i32_0 : i32, i32
  }
  func.func @transform_3(%arg0: i32) -> (i32, i32) {
    %c0_i32 = arith.constant 0 : i32
    %c0_i32_0 = arith.constant 0 : i32
    %c0_i32_1 = arith.constant 0 : i32
    return %c0_i32, %c0_i32_0 : i32, i32
  }
  func.func @transform_4(%arg0: i32) -> (i32, i32) {
    %c0_i32 = arith.constant 0 : i32
    %c0_i32_0 = arith.constant 0 : i32
    %c0_i32_1 = arith.constant 0 : i32
    return %c0_i32, %c0_i32_0 : i32, i32
  }
  func.func @transform_5(%arg0: i32) -> (i32, i32) {
    %c0_i32 = arith.constant 0 : i32
    %c0_i32_0 = arith.constant 0 : i32
    return %arg0, %c0_i32 : i32, i32
  }
}

</mosaic_0001>

<llo_original>
// kernel: mlp_forward.1
$region0: #{mlp_forward.1}
  #allocation0 [shape = 'u32[]', space=smem, size = 0x4, offset = 0x4, fixed_abs, tag = 'smem constant byte address 0x4 - core index']
  #allocation1 [shape = 'u32[144,128]{1,0:T(1,128)}', space=vmem, size = 0x12000, scoped, tag = 'internal scratch']
  %s0 = inlined_call_operand.vmem [shape: f32[8,128], index: 0, kind: input, shape index: {}]
  %s1 = inlined_call_operand.vmem [shape: f32[128,128], index: 1, kind: input, shape index: {}]
  %s2 = inlined_call_operand.vmem [shape: f32[1,128], index: 2, kind: input, shape index: {}]
  %s3 = inlined_call_operand.vmem [shape: f32[128,128], index: 3, kind: input, shape index: {}]
  %s4 = inlined_call_operand.vmem [shape: f32[1,128], index: 4, kind: input, shape index: {}]
  %s5 = inlined_call_operand.hbm [shape: f32[8,128], index: 5, kind: output, shape index: {}]
  %s6 = sld [smem:[#allocation0]]
  $region30: #{mlp_forward.1} parent=0
    _
  %s8 = ssub.s32 1, %s6
  %s9 = scalar_select 0, %s8, %s6
  $region1: #{mlp_forward.1} parent=0
    #allocation2 [shape = 'u8[4096]{0}', space=vmem, size = 0x1000, scoped, tag = 'output window, operand 0, single buffered']
    #allocation3 [shape = 's32[1]{0}', space=sflag, size = 0x4, scoped, tag = 'scoped memory for mlp_forward.1']
    %10 = vsyncpa [#allocation3], 0
    // Predicated region
    $region2: #{mlp_forward.1} parent=1 // pred_check
      _
    $region3: #{mlp_forward.1} parent=1 // pred_check_branch
      %12 = sbr.rel (0) target = $region5
    $region4: #{mlp_forward.1} parent=1 // pred_region
      _
    $region5: #{mlp_forward.1} parent=1 // pred_fallthru
      _
    // Predicated region
    $region6: #{mlp_forward.1} parent=1 // pred_check
      _
    $region7: #{mlp_forward.1} parent=1 // pred_check_branch
      %14 = sbr.rel (0) target = $region9
    $region8: #{mlp_forward.1} parent=1 // pred_region
      _
    $region9: #{mlp_forward.1} parent=1 // pred_fallthru
      _
    // Predicated region
    $region10: #{mlp_forward.1} parent=1 // pred_check
      _
    $region11: #{mlp_forward.1} parent=1 // pred_check_branch
      %16 = sbr.rel (0) target = $region13
    $region12: #{mlp_forward.1} parent=1 // pred_region
      _
    $region13: #{mlp_forward.1} parent=1 // pred_fallthru
      _
    // Predicated region
    $region14: #{mlp_forward.1} parent=1 // pred_check
      _
    $region15: #{mlp_forward.1} parent=1 // pred_check_branch
      %18 = sbr.rel (0) target = $region17
    $region16: #{mlp_forward.1} parent=1 // pred_region
      _
    $region17: #{mlp_forward.1} parent=1 // pred_fallthru
      _
    // Predicated region
    $region18: #{mlp_forward.1} parent=1 // pred_check
      _
    $region19: #{mlp_forward.1} parent=1 // pred_check_branch
      %20 = sbr.rel (0) target = $region21
    $region20: #{mlp_forward.1} parent=1 // pred_region
      _
    $region21: #{mlp_forward.1} parent=1 // pred_fallthru
      _
    %v21 = vld [vmem:[%s0] sm:$0xff]
    %v22 = vld [vmem:[%s1] sm:$0xff]
    %v23 = vld [vmem:[%s1 + $0x8] sm:$0xff]
    %v24 = vld [vmem:[%s1 + $0x10] sm:$0xff]
    %v25 = vld [vmem:[%s1 + $0x18] sm:$0xff]
    %v26 = vld [vmem:[%s1 + $0x20] sm:$0xff]
    %v27 = vld [vmem:[%s1 + $0x28] sm:$0xff]
    %v28 = vld [vmem:[%s1 + $0x30] sm:$0xff]
    %v29 = vld [vmem:[%s1 + $0x38] sm:$0xff]
    %v30 = vld [vmem:[%s1 + $0x40] sm:$0xff]
    %v31 = vld [vmem:[%s1 + $0x48] sm:$0xff]
    %v32 = vld [vmem:[%s1 + $0x50] sm:$0xff]
    %v33 = vld [vmem:[%s1 + $0x58] sm:$0xff]
    %v34 = vld [vmem:[%s1 + $0x60] sm:$0xff]
    %v35 = vld [vmem:[%s1 + $0x68] sm:$0xff]
    %v36 = vld [vmem:[%s1 + $0x70] sm:$0xff]
    %v37 = vld [vmem:[%s1 + $0x78] sm:$0xff]
    %v38 = vld [vmem:[%s2] sm:$0x1]
    %v40 = vlaneseq
    %v41 = vshrl.u32 %v40, 7
    %v42 = vsub.s32 0, %v41
    %v43 = vrot.slane %v38, %v42
    %45 = vmatprep.subr.mxu0 0.0
    %46 = vmatpush1.msra.mxu0 %v22
    %47 = vmatprep.subr.mxu0 0.0
    %48 = vmatpush1.msra.mxu0 %v23
    %49 = vmatprep.subr.mxu0 0.0
    %50 = vmatpush1.msra.mxu0 %v24
    %51 = vmatprep.subr.mxu0 0.0
    %52 = vmatpush1.msra.mxu0 %v25
    %53 = vmatprep.subr.mxu0 0.0
    %54 = vmatpush1.msra.mxu0 %v26
    %55 = vmatprep.subr.mxu0 0.0
    %56 = vmatpush1.msra.mxu0 %v27
    %57 = vmatprep.subr.mxu0 0.0
    %58 = vmatpush1.msra.mxu0 %v28
    %59 = vmatprep.subr.mxu0 0.0
    %60 = vmatpush1.msra.mxu0 %v29
    %61 = vmatprep.subr.mxu0 0.0
    %62 = vmatpush1.msra.mxu0 %v30
    %63 = vmatprep.subr.mxu0 0.0
    %64 = vmatpush1.msra.mxu0 %v31
    %65 = vmatprep.subr.mxu0 0.0
    %66 = vmatpush1.msra.mxu0 %v32
    %67 = vmatprep.subr.mxu0 0.0
    %68 = vmatpush1.msra.mxu0 %v33
    %69 = vmatprep.subr.mxu0 0.0
    %70 = vmatpush1.msra.mxu0 %v34
    %71 = vmatprep.subr.mxu0 0.0
    %72 = vmatpush1.msra.mxu0 %v35
    %73 = vmatprep.subr.mxu0 0.0
    %74 = vmatpush1.msra.mxu0 %v36
    %75 = vmatprep.subr.mxu0 0.0
    %76 = vmatpush1.msra.mxu0 %v37
    %77 = vmatprep.subr.mxu0 0.0
    %78 = vmatpush1.msra.mxu0 0.0
    %79 = vmatprep.subr.mxu0 0.0
    %80 = vmatpush1.msra.mxu0 0.0
    %81 = vmatprep.subr.mxu0 0.0
    %82 = vmatpush1.msra.mxu0 0.0
    %83 = vmatprep.subr.mxu0 0.0
    %84 = vmatpush1.msra.mxu0 0.0
    %85 = vmatprep.subr.mxu0 0.0
    %86 = vmatpush1.msra.mxu0 0.0
    %87 = vmatprep.subr.mxu0 0.0
    %88 = vmatpush1.msra.mxu0 0.0
    %89 = vmatprep.subr.mxu0 0.0
    %90 = vmatpush1.msra.mxu0 0.0
    %91 = vmatprep.subr.mxu0 0.0
    %92 = vmatpush1.msra.mxu0 0.0
    %93 = vmatprep.subr.mxu0 0.0
    %94 = vmatpush1.msra.mxu0 0.0
    %95 = vmatprep.subr.mxu0 0.0
    %96 = vmatpush1.msra.mxu0 0.0
    %97 = vmatprep.subr.mxu0 0.0
    %98 = vmatpush1.msra.mxu0 0.0
    %99 = vmatprep.subr.mxu0 0.0
    %100 = vmatpush1.msra.mxu0 0.0
    %101 = vmatprep.subr.mxu0 0.0
    %102 = vmatpush1.msra.mxu0 0.0
    %103 = vmatprep.subr.mxu0 0.0
    %104 = vmatpush1.msra.mxu0 0.0
    %105 = vmatprep.subr.mxu0 0.0
    %106 = vmatpush1.msra.mxu0 0.0
    %107 = vmatprep.subr.mxu0 0.0
    %108 = vmatpush1.msra.mxu0 0.0
    %109 = vmatprep.mubr.f32.mxu0 0.0
    %110 = vmatmul.mubr.f32.gmra.mrb[0].mxu0 %v21
    %v111 = vpop.f32.mrb[0].mxu0
    %v112 = vadd.f32 %v43, %v111
    %v113 = vpop.f32.mrb[0].mxu0
    %114 = vdwg.mxu0
    %v115 = vtanh.pop %v112
    %v116 = vld [vmem:[%s3] sm:$0xff]
    %v117 = vld [vmem:[%s3 + $0x8] sm:$0xff]
    %v118 = vld [vmem:[%s3 + $0x10] sm:$0xff]
    %v119 = vld [vmem:[%s3 + $0x18] sm:$0xff]
    %v120 = vld [vmem:[%s3 + $0x20] sm:$0xff]
    %v121 = vld [vmem:[%s3 + $0x28] sm:$0xff]
    %v122 = vld [vmem:[%s3 + $0x30] sm:$0xff]
    %v123 = vld [vmem:[%s3 + $0x38] sm:$0xff]
    %v124 = vld [vmem:[%s3 + $0x40] sm:$0xff]
    %v125 = vld [vmem:[%s3 + $0x48] sm:$0xff]
    %v126 = vld [vmem:[%s3 + $0x50] sm:$0xff]
    %v127 = vld [vmem:[%s3 + $0x58] sm:$0xff]
    %v128 = vld [vmem:[%s3 + $0x60] sm:$0xff]
    %v129 = vld [vmem:[%s3 + $0x68] sm:$0xff]
    %v130 = vld [vmem:[%s3 + $0x70] sm:$0xff]
    %v131 = vld [vmem:[%s3 + $0x78] sm:$0xff]
    %v132 = vld [vmem:[%s4] sm:$0x1]
    %v134 = vlaneseq
    %v135 = vshrl.u32 %v134, 7
    %v136 = vsub.s32 0, %v135
    %v137 = vrot.slane %v132, %v136
    %139 = vmatprep.subr.mxu0 0.0
    %140 = vmatpush1.msra.mxu0 %v116
    %141 = vmatprep.subr.mxu0 0.0
    %142 = vmatpush1.msra.mxu0 %v117
    %143 = vmatprep.subr.mxu0 0.0
    %144 = vmatpush1.msra.mxu0 %v118
    %145 = vmatprep.subr.mxu0 0.0
    %146 = vmatpush1.msra.mxu0 %v119
    %147 = vmatprep.subr.mxu0 0.0
    %148 = vmatpush1.msra.mxu0 %v120
    %149 = vmatprep.subr.mxu0 0.0
    %150 = vmatpush1.msra.mxu0 %v121
    %151 = vmatprep.subr.mxu0 0.0
    %152 = vmatpush1.msra.mxu0 %v122
    %153 = vmatprep.subr.mxu0 0.0
    %154 = vmatpush1.msra.mxu0 %v123
    %155 = vmatprep.subr.mxu0 0.0
    %156 = vmatpush1.msra.mxu0 %v124
    %157 = vmatprep.subr.mxu0 0.0
    %158 = vmatpush1.msra.mxu0 %v125
    %159 = vmatprep.subr.mxu0 0.0
    %160 = vmatpush1.msra.mxu0 %v126
    %161 = vmatprep.subr.mxu0 0.0
    %162 = vmatpush1.msra.mxu0 %v127
    %163 = vmatprep.subr.mxu0 0.0
    %164 = vmatpush1.msra.mxu0 %v128
    %165 = vmatprep.subr.mxu0 0.0
    %166 = vmatpush1.msra.mxu0 %v129
    %167 = vmatprep.subr.mxu0 0.0
    %168 = vmatpush1.msra.mxu0 %v130
    %169 = vmatprep.subr.mxu0 0.0
    %170 = vmatpush1.msra.mxu0 %v131
    %171 = vmatprep.subr.mxu0 0.0
    %172 = vmatpush1.msra.mxu0 0.0
    %173 = vmatprep.subr.mxu0 0.0
    %174 = vmatpush1.msra.mxu0 0.0
    %175 = vmatprep.subr.mxu0 0.0
    %176 = vmatpush1.msra.mxu0 0.0
    %177 = vmatprep.subr.mxu0 0.0
    %178 = vmatpush1.msra.mxu0 0.0
    %179 = vmatprep.subr.mxu0 0.0
    %180 = vmatpush1.msra.mxu0 0.0
    %181 = vmatprep.subr.mxu0 0.0
    %182 = vmatpush1.msra.mxu0 0.0
    %183 = vmatprep.subr.mxu0 0.0
    %184 = vmatpush1.msra.mxu0 0.0
    %185 = vmatprep.subr.mxu0 0.0
    %186 = vmatpush1.msra.mxu0 0.0
    %187 = vmatprep.subr.mxu0 0.0
    %188 = vmatpush1.msra.mxu0 0.0
    %189 = vmatprep.subr.mxu0 0.0
    %190 = vmatpush1.msra.mxu0 0.0
    %191 = vmatprep.subr.mxu0 0.0
    %192 = vmatpush1.msra.mxu0 0.0
    %193 = vmatprep.subr.mxu0 0.0
    %194 = vmatpush1.msra.mxu0 0.0
    %195 = vmatprep.subr.mxu0 0.0
    %196 = vmatpush1.msra.mxu0 0.0
    %197 = vmatprep.subr.mxu0 0.0
    %198 = vmatpush1.msra.mxu0 0.0
    %199 = vmatprep.subr.mxu0 0.0
    %200 = vmatpush1.msra.mxu0 0.0
    %201 = vmatprep.subr.mxu0 0.0
    %202 = vmatpush1.msra.mxu0 0.0
    %203 = vmatprep.mubr.f32.mxu0 0.0
    %204 = vmatmul.mubr.f32.gmra.mrb[0].mxu0 %v115
    %v205 = vpop.f32.mrb[0].mxu0
    %v206 = vadd.f32 %v137, %v205
    %v207 = vpop.f32.mrb[0].mxu0
    %208 = vdwg.mxu0
    %209 = vst [vmem:[#allocation2] sm:$0xff] %v206
    // Predicated region
    $region22: #{mlp_forward.1} parent=1 // pred_check
      _
    $region23: #{mlp_forward.1} parent=1 // pred_check_branch
      %211 = sbr.rel (0) target = $region25
    $region24: #{mlp_forward.1} parent=1 // pred_region
      %s213 = ssub.s32 128, 128
      %214 = vsyncadd [#allocation3], %s213
      %s216 = sshll.u32 [#allocation2], 4
      %s217 = int_to_ptr.vmem [resolvable:$true] %s216
      %219 = dma.vmem_to_hbm [thread:$0]  %s217, 128, %s5, [#allocation3]
    $region25: #{mlp_forward.1} parent=1 // pred_fallthru
      _
    // Predicated region
    $region26: #{mlp_forward.1} parent=1 // pred_check
      _
    $region27: #{mlp_forward.1} parent=1 // pred_check_branch
      %221 = sbr.rel (0) target = $region29
    $region28: #{mlp_forward.1} parent=1 // pred_region
      %222 = dma.done [#allocation3], 128
    $region29: #{mlp_forward.1} parent=1 // pred_fallthru
      _
    %223 = vsyncpa [#allocation3], 1

</llo_original>
